<compile_context>
chip_gen: v6e
topology: v6e:2x2x1
jax: 0.10.0
libtpu: 0.0.40
codegen_flags: <defaults>
</compile_context>

<pallas_src>
import jax
import jax.numpy as jnp
from jax.experimental import pallas as pl
from jax.experimental.pallas import tpu as pltpu

EMBED_SIZE = 768
HIDDEN = 256
LEX = 194            # empath lexicon features
NUM_CLASSES_1 = 3    # VAD head (fc_2)
NUM_CLASSES_2 = 11   # emotion head (fc_3)
N_OUT = NUM_CLASSES_1 + NUM_CLASSES_2   # 14
OUT_PAD = 128        # lane-dense padded output width


def _mtl_fused_kernel(s_ref, lex_ref, ws_ref, wl_ref, b_ref, scale_ref,
                      off_ref, out_ref):
    # One fused contraction for both heads (fc_1 already folded into ws/wl/b):
    #   z = sentences @ Ws + lex @ Wl + b        -> [TB, 128]
    z = (jnp.dot(s_ref[...], ws_ref[...], preferred_element_type=jnp.float32)
         + jnp.dot(lex_ref[...], wl_ref[...], preferred_element_type=jnp.float32)
         + b_ref[...])
    # VAD columns (0..2): tanh*2+3; emotion columns (3..13): tanh; padding
    # columns: tanh(0)*1+0 = 0.  scale/offset are resident [1,128] rows.
    y = jnp.tanh(z) * scale_ref[...] + off_ref[...]
    out_ref[...] = y.astype(out_ref.dtype)


def fuse_params(params, weights_dtype=jnp.float32):
    """Fold fc_1 into fc_2/fc_3 (exact: no nonlinearity / dropout in between),
    fuse + zero-pad both heads into lane-dense [*, 128] weights, and build the
    per-column epilogue scale/offset rows."""
    w1, b1 = params["w1"], params["b1"]      # [768,256], [256]
    w2, b2 = params["w2"], params["b2"]      # [450,3],   [3]
    w3, b3 = params["w3"], params["b3"]      # [450,11],  [11]
    w2a, w2b = w2[:HIDDEN], w2[HIDDEN:]
    w3a, w3b = w3[:HIDDEN], w3[HIDDEN:]

    ws = jnp.concatenate([w1 @ w2a, w1 @ w3a], axis=1)             # [768, 14]
    wl = jnp.concatenate([w2b, w3b], axis=1)                       # [194, 14]
    bias = jnp.concatenate([b1 @ w2a + b2, b1 @ w3a + b3])         # [14]

    ws_p = jnp.zeros((EMBED_SIZE, OUT_PAD), jnp.float32).at[:, :N_OUT].set(ws)
    wl_p = jnp.zeros((LEX, OUT_PAD), jnp.float32).at[:, :N_OUT].set(wl)
    b_p = jnp.zeros((1, OUT_PAD), jnp.float32).at[:, :N_OUT].set(bias)

    scale = jnp.ones((1, OUT_PAD), jnp.float32).at[:, :NUM_CLASSES_1].set(2.0)
    offset = jnp.zeros((1, OUT_PAD), jnp.float32).at[:, :NUM_CLASSES_1].set(3.0)
    return {
        "ws": ws_p.astype(weights_dtype),   # resident MXU operand
        "wl": wl_p.astype(weights_dtype),   # resident MXU operand
        "b": b_p,                           # bias / epilogue stay f32
        "scale": scale,
        "offset": offset,
    }


def _round_up(x, m):
    return ((x + m - 1) // m) * m


def _pick_batch_tile(B, block_b):
    """Batch tile: multiple of 8, as large as block_b allows, but >=2 grid
    steps when B is big enough so v7x's 2 TensorCores both stream."""
    if B <= 16:
        return B                      # tiny batch: single (possibly sub-8) block
    if B <= block_b:
        return min(_round_up(pl.cdiv(B, 2), 8), block_b)
    return block_b


def net_heads_forward(sentences, lexicon_features, fused, *, block_b=2048,
                      out_dtype=jnp.float32):
    """sentences: [B, 768] (CLS embeddings), lexicon_features: [B, 194].
    Returns (vad [B,3], emotions [B,11]) in float32.  Inputs are consumed in
    their producer dtype (no wrapper-side cast = no extra HBM pass)."""
    B = sentences.shape[0]
    TB = _pick_batch_tile(B, block_b)
    grid = (pl.cdiv(B, TB),)

    s_item = jnp.dtype(sentences.dtype).itemsize
    l_item = jnp.dtype(lexicon_features.dtype).itemsize
    w_item = jnp.dtype(fused["ws"].dtype).itemsize
    o_item = jnp.dtype(out_dtype).itemsize

    # Kernel really computes over the 128-wide padded slab.
    cost = pl.CostEstimate(
        flops=2 * B * (EMBED_SIZE + LEX) * OUT_PAD,
        transcendentals=B * OUT_PAD,
        bytes_accessed=(B * EMBED_SIZE * s_item + B * LEX * l_item        # activations
                        + (EMBED_SIZE + LEX) * OUT_PAD * w_item           # weights
                        + 3 * OUT_PAD * 4                                 # b/scale/off
                        + B * OUT_PAD * o_item),                          # output slab
    )

    # Double-buffered streams + resident weights; clamp <=48 MiB for v7x.
    vmem_need = (2 * TB * (EMBED_SIZE * s_item + LEX * l_item)
                 + 2 * TB * OUT_PAD * o_item
                 + (EMBED_SIZE + LEX) * OUT_PAD * w_item + 3 * OUT_PAD * 4)
    vmem_limit = min(max(32 * 1024 * 1024, int(1.25 * vmem_need)),
                     48 * 1024 * 1024)

    out = pl.pallas_call(
        _mtl_fused_kernel,
        out_shape=jax.ShapeDtypeStruct((B, OUT_PAD), out_dtype),
        grid=grid,
        in_specs=[
            pl.BlockSpec((TB, EMBED_SIZE), lambda i: (i, 0)),       # sentences
            pl.BlockSpec((TB, LEX), lambda i: (i, 0)),              # lexicon
            pl.BlockSpec((EMBED_SIZE, OUT_PAD), lambda i: (0, 0)),  # Ws (resident)
            pl.BlockSpec((LEX, OUT_PAD), lambda i: (0, 0)),         # Wl (resident)
            pl.BlockSpec((1, OUT_PAD), lambda i: (0, 0)),           # bias
            pl.BlockSpec((1, OUT_PAD), lambda i: (0, 0)),           # scale
            pl.BlockSpec((1, OUT_PAD), lambda i: (0, 0)),           # offset
        ],
        out_specs=pl.BlockSpec((TB, OUT_PAD), lambda i: (i, 0)),
        compiler_params=pltpu.CompilerParams(
            dimension_semantics=("parallel",),   # shards batch across TCs (v7x)
            vmem_limit_bytes=vmem_limit,
        ),
        cost_estimate=cost,
    )(sentences, lexicon_features, fused["ws"], fused["wl"], fused["b"],
      fused["scale"], fused["offset"])

    # Wrapper-side column slicing is free layout plumbing.
    vad = out[:, :NUM_CLASSES_1].astype(jnp.float32)
    emo = out[:, NUM_CLASSES_1:N_OUT].astype(jnp.float32)
    return vad, emo


def init_params(key, bias_val=0.01):
    """xavier_normal_ weights (as in Net.init_weights(dist='normal')),
    biases filled with 0.01.  Stored as [in, out] for x @ W."""
    def xavier_normal(k, fan_in, fan_out):
        std = (2.0 / (fan_in + fan_out)) ** 0.5
        return std * jax.random.normal(k, (fan_in, fan_out), dtype=jnp.float32)

    k1, k2, k3 = jax.random.split(key, 3)
    concat_dim = HIDDEN + LEX
    return {
        "w1": xavier_normal(k1, EMBED_SIZE, HIDDEN),
        "b1": jnp.full((HIDDEN,), bias_val, jnp.float32),
        "w2": xavier_normal(k2, concat_dim, NUM_CLASSES_1),
        "b2": jnp.full((NUM_CLASSES_1,), bias_val, jnp.float32),
        "w3": xavier_normal(k3, concat_dim, NUM_CLASSES_2),
        "b3": jnp.full((NUM_CLASSES_2,), bias_val, jnp.float32),
    }


def reference_forward(sentences, lex, params):
    """Pure-JAX reference mirroring forward_VAD / forward_emotions (unfused)."""
    h = sentences @ params["w1"] + params["b1"]
    cat = jnp.concatenate([h, lex], axis=-1)
    vad = jnp.tanh(cat @ params["w2"] + params["b2"]) * 2.0 + 3.0
    emo = jnp.tanh(cat @ params["w3"] + params["b3"])
    return vad, emo


if __name__ == "__main__":
    key = jax.random.PRNGKey(0)
    k_param, k_sent, k_lex = jax.random.split(key, 3)

    B = 8
    params = init_params(k_param)
    # CLS embeddings standing in for self.bert(input_ids, attn_masks)[0][:, 0, :]
    sentences = jax.random.normal(k_sent, (B, EMBED_SIZE), dtype=jnp.float32)
    lexicon_features = jax.random.uniform(k_lex, (B, LEX), dtype=jnp.float32)

    vad_ref, emo_ref = reference_forward(sentences, lexicon_features, params)

    fused = fuse_params(params, weights_dtype=jnp.float32)

    # --- f32 path (exact up to fp reassociation from the fc_1 fold) ---
    vad, emo = net_heads_forward(sentences, lexicon_features, fused)
    vad, emo = jax.block_until_ready((vad, emo))
    assert vad.shape == (B, NUM_CLASSES_1) and emo.shape == (B, NUM_CLASSES_2)
    assert jnp.allclose(vad, vad_ref, atol=1e-3, rtol=1e-3)
    assert jnp.allclose(emo, emo_ref, atol=1e-3, rtol=1e-3)

    # --- bf16 output-slab path (writeback shrink), looser tolerance ---
    vad_b, emo_b = net_heads_forward(sentences, lexicon_features, fused,
                                     out_dtype=jnp.bfloat16)
    vad_b, emo_b = jax.block_until_ready((vad_b, emo_b))
    assert jnp.allclose(vad_b, vad_ref, atol=5e-2, rtol=5e-2)
    assert jnp.allclose(emo_b, emo_ref, atol=5e-2, rtol=5e-2)

    print("KERNEL_OK")
</pallas_src>

<mosaic_0001>
module attributes {stable_mosaic.version = 11 : i64} {
  func.func @_mtl_fused_kernel(%arg0: i32, %arg1: memref<8x768xf32, #tpu.memory_space<vmem>>, %arg2: memref<8x194xf32, #tpu.memory_space<vmem>>, %arg3: memref<768x128xf32, #tpu.memory_space<vmem>>, %arg4: memref<194x128xf32, #tpu.memory_space<vmem>>, %arg5: memref<1x128xf32, #tpu.memory_space<vmem>>, %arg6: memref<1x128xf32, #tpu.memory_space<vmem>>, %arg7: memref<1x128xf32, #tpu.memory_space<vmem>>, %arg8: memref<8x128xf32, #tpu.memory_space<vmem>>) attributes {dimension_semantics = [#tpu.dimension_semantics<parallel>], iteration_bounds = array<i64: 1>, scalar_prefetch = 0 : i64, scratch_operands = 0 : i64, tpu.core_type = #tpu.core_type<tc>, window_params = [{transform_indices = @transform_0, window_bounds = array<i64: 8, 768>}, {transform_indices = @transform_1, window_bounds = array<i64: 8, 194>}, {pipeline_mode = #tpu.pipeline_mode<synchronous>, transform_indices = @transform_2, window_bounds = array<i64: 768, 128>}, {pipeline_mode = #tpu.pipeline_mode<synchronous>, transform_indices = @transform_3, window_bounds = array<i64: 194, 128>}, {pipeline_mode = #tpu.pipeline_mode<synchronous>, transform_indices = @transform_4, window_bounds = array<i64: 1, 128>}, {pipeline_mode = #tpu.pipeline_mode<synchronous>, transform_indices = @transform_5, window_bounds = array<i64: 1, 128>}, {pipeline_mode = #tpu.pipeline_mode<synchronous>, transform_indices = @transform_6, window_bounds = array<i64: 1, 128>}, {transform_indices = @transform_7, window_bounds = array<i64: 8, 128>}]} {
    %c0 = arith.constant 0 : index
    %c0_0 = arith.constant 0 : index
    %0 = vector.load %arg1[%c0, %c0_0] : memref<8x768xf32, #tpu.memory_space<vmem>>, vector<8x768xf32>
    %c0_1 = arith.constant 0 : index
    %c0_2 = arith.constant 0 : index
    %1 = vector.load %arg3[%c0_1, %c0_2] : memref<768x128xf32, #tpu.memory_space<vmem>>, vector<768x128xf32>
    %cst = arith.constant dense<0.000000e+00> : vector<8x128xf32>
    %2 = tpu.matmul %0, %1, %cst {dimension_numbers = #tpu.dot_dimension_numbers<[1], [0], [0], [1], [0, 0, 1, 1], [], []>} : vector<8x768xf32>, vector<768x128xf32>, vector<8x128xf32> -> vector<8x128xf32>
    %c0_3 = arith.constant 0 : index
    %c0_4 = arith.constant 0 : index
    %3 = vector.load %arg2[%c0_3, %c0_4] : memref<8x194xf32, #tpu.memory_space<vmem>>, vector<8x194xf32>
    %c0_5 = arith.constant 0 : index
    %c0_6 = arith.constant 0 : index
    %4 = vector.load %arg4[%c0_5, %c0_6] : memref<194x128xf32, #tpu.memory_space<vmem>>, vector<194x128xf32>
    %cst_7 = arith.constant dense<0.000000e+00> : vector<8x128xf32>
    %5 = tpu.matmul %3, %4, %cst_7 {dimension_numbers = #tpu.dot_dimension_numbers<[1], [0], [0], [1], [0, 0, 1, 1], [], []>} : vector<8x194xf32>, vector<194x128xf32>, vector<8x128xf32> -> vector<8x128xf32>
    %6 = arith.addf %2, %5 : vector<8x128xf32>
    %c0_8 = arith.constant 0 : index
    %c0_9 = arith.constant 0 : index
    %7 = vector.load %arg5[%c0_8, %c0_9] : memref<1x128xf32, #tpu.memory_space<vmem>>, vector<1x128xf32>
    %8 = vector.broadcast %7 : vector<1x128xf32> to vector<8x128xf32>
    %9 = arith.addf %6, %8 : vector<8x128xf32>
    %10 = math.tanh %9 : vector<8x128xf32>
    %c0_10 = arith.constant 0 : index
    %c0_11 = arith.constant 0 : index
    %11 = vector.load %arg6[%c0_10, %c0_11] : memref<1x128xf32, #tpu.memory_space<vmem>>, vector<1x128xf32>
    %12 = vector.broadcast %11 : vector<1x128xf32> to vector<8x128xf32>
    %13 = arith.mulf %10, %12 : vector<8x128xf32>
    %c0_12 = arith.constant 0 : index
    %c0_13 = arith.constant 0 : index
    %14 = vector.load %arg7[%c0_12, %c0_13] : memref<1x128xf32, #tpu.memory_space<vmem>>, vector<1x128xf32>
    %15 = vector.broadcast %14 : vector<1x128xf32> to vector<8x128xf32>
    %16 = arith.addf %13, %15 : vector<8x128xf32>
    %c0_14 = arith.constant 0 : index
    %c0_15 = arith.constant 0 : index
    %17 = vector.load %arg8[%c0_14, %c0_15] : memref<8x128xf32, #tpu.memory_space<vmem>>, vector<8x128xf32>
    tpu.vector_store %arg8[%c0_14, %c0_15], %16 {strides = array<i32>} : memref<8x128xf32, #tpu.memory_space<vmem>>, vector<8x128xf32>,
    return
  }
  func.func @transform_0(%arg0: i32) -> (i32, i32) {
    %c0_i32 = arith.constant 0 : i32
    %c0_i32_0 = arith.constant 0 : i32
    return %arg0, %c0_i32 : i32, i32
  }
  func.func @transform_1(%arg0: i32) -> (i32, i32) {
    %c0_i32 = arith.constant 0 : i32
    %c0_i32_0 = arith.constant 0 : i32
    return %arg0, %c0_i32 : i32, i32
  }
  func.func @transform_2(%arg0: i32) -> (i32, i32) {
    %c0_i32 = arith.constant 0 : i32
    %c0_i32_0 = arith.constant 0 : i32
    %c0_i32_1 = arith.constant 0 : i32
    return %c0_i32, %c0_i32_0 : i32, i32
  }
  func.func @transform_3(%arg0: i32) -> (i32, i32) {
    %c0_i32 = arith.constant 0 : i32
    %c0_i32_0 = arith.constant 0 : i32
    %c0_i32_1 = arith.constant 0 : i32
    return %c0_i32, %c0_i32_0 : i32, i32
  }
  func.func @transform_4(%arg0: i32) -> (i32, i32) {
    %c0_i32 = arith.constant 0 : i32
    %c0_i32_0 = arith.constant 0 : i32
    %c0_i32_1 = arith.constant 0 : i32
    return %c0_i32, %c0_i32_0 : i32, i32
  }
  func.func @transform_5(%arg0: i32) -> (i32, i32) {
    %c0_i32 = arith.constant 0 : i32
    %c0_i32_0 = arith.constant 0 : i32
    %c0_i32_1 = arith.constant 0 : i32
    return %c0_i32, %c0_i32_0 : i32, i32
  }
  func.func @transform_6(%arg0: i32) -> (i32, i32) {
    %c0_i32 = arith.constant 0 : i32
    %c0_i32_0 = arith.constant 0 : i32
    %c0_i32_1 = arith.constant 0 : i32
    return %c0_i32, %c0_i32_0 : i32, i32
  }
  func.func @transform_7(%arg0: i32) -> (i32, i32) {
    %c0_i32 = arith.constant 0 : i32
    %c0_i32_0 = arith.constant 0 : i32
    return %arg0, %c0_i32 : i32, i32
  }
}

</mosaic_0001>

<llo_original>
// kernel: tpu_custom_call.1
$region0: #{tpu_custom_call.1}
  #allocation0 [shape = 'u32[]', space=smem, size = 0x4, offset = 0x4, fixed_abs, tag = 'smem constant byte address 0x4 - core index']
  #allocation1 [shape = 'u32[144,128]{1,0:T(1,128)}', space=vmem, size = 0x12000, scoped, tag = 'internal scratch']
  %s0 = inlined_call_operand.hbm [shape: f32[8,768], index: 0, kind: input, shape index: {}]
  %s1 = inlined_call_operand.hbm [shape: f32[8,194], index: 1, kind: input, shape index: {}]
  %s2 = inlined_call_operand.hbm [shape: f32[768,128], index: 2, kind: input, shape index: {}]
  %s3 = inlined_call_operand.hbm [shape: f32[194,128], index: 3, kind: input, shape index: {}]
  %s4 = inlined_call_operand.vmem [shape: f32[1,128], index: 4, kind: input, shape index: {}]
  %s5 = inlined_call_operand.vmem [shape: f32[1,128], index: 5, kind: input, shape index: {}]
  %s6 = inlined_call_operand.vmem [shape: f32[1,128], index: 6, kind: input, shape index: {}]
  %s7 = inlined_call_operand.hbm [shape: f32[8,128], index: 7, kind: output, shape index: {}]
  %s8 = sld [smem:[#allocation0]]
  $region54: #{tpu_custom_call.1} parent=0
    _
  %s10 = ssub.s32 1, %s8
  %s11 = scalar_select 0, %s10, %s8
  $region1: #{tpu_custom_call.1} parent=0
    #allocation2 [shape = 'u8[24576]{0}', space=vmem, size = 0x6000, scoped, tag = 'input window, operand 0, single buffered']
    #allocation3 [shape = 's32[1]{0}', space=sflag, size = 0x4, scoped, tag = 'scoped memory for tpu_custom_call.1']
    #allocation4 [shape = 's32[1]{0}', space=sflag, size = 0x4, scoped, tag = 'scoped memory for tpu_custom_call.1']
    #allocation5 [shape = 'u8[8192]{0}', space=vmem, size = 0x2000, scoped, tag = 'input window, operand 1, single buffered']
    #allocation6 [shape = 's32[1]{0}', space=sflag, size = 0x4, scoped, tag = 'scoped memory for tpu_custom_call.1']
    #allocation7 [shape = 'u8[393216]{0}', space=vmem, size = 0x60000, scoped, tag = 'input window, operand 2, single buffered']
    #allocation8 [shape = 'u8[102400]{0}', space=vmem, size = 0x19000, scoped, tag = 'input window, operand 3, single buffered']
    #allocation9 [shape = 's32[1]{0}', space=sflag, size = 0x4, scoped, tag = 'scoped memory for tpu_custom_call.1']
    #allocation10 [shape = 'u8[4096]{0}', space=vmem, size = 0x1000, scoped, tag = 'output window, operand 0, single buffered']
    %12 = vsyncpa [#allocation3], 0
    %13 = vsyncpa [#allocation6], 0
    %14 = vsyncpa [#allocation9], 0
    %15 = vsyncpa [#allocation4], 0
    // Predicated region
    $region2: #{tpu_custom_call.1} parent=1 // pred_check
      _
    $region3: #{tpu_custom_call.1} parent=1 // pred_check_branch
      %17 = sbr.rel (0) target = $region5
    $region4: #{tpu_custom_call.1} parent=1 // pred_region
      %s19 = ssub.s32 768, 768
      %20 = vsyncadd [#allocation3], %s19
      %s22 = sshll.u32 [#allocation2], 4
      %s23 = int_to_ptr.vmem [resolvable:$true] %s22
      %25 = dma.hbm_to_vmem [thread:$0]  %s0, 768, %s23, [#allocation3]
    $region5: #{tpu_custom_call.1} parent=1 // pred_fallthru
      _
    // Predicated region
    $region6: #{tpu_custom_call.1} parent=1 // pred_check
      _
    $region7: #{tpu_custom_call.1} parent=1 // pred_check_branch
      %27 = sbr.rel (0) target = $region9
    $region8: #{tpu_custom_call.1} parent=1 // pred_region
      %s29 = ssub.s32 256, 256
      %30 = vsyncadd [#allocation6], %s29
      %s32 = sshll.u32 [#allocation5], 4
      %s33 = int_to_ptr.vmem [resolvable:$true] %s32
      %35 = dma.hbm_to_vmem [thread:$0]  %s1, 256, %s33, [#allocation6]
    $region9: #{tpu_custom_call.1} parent=1 // pred_fallthru
      _
    // Predicated region
    $region10: #{tpu_custom_call.1} parent=1 // pred_check
      _
    $region11: #{tpu_custom_call.1} parent=1 // pred_check_branch
      %37 = sbr.rel (0) target = $region13
    $region12: #{tpu_custom_call.1} parent=1 // pred_region
      %s39 = ssub.s32 12288, 12288
      %40 = vsyncadd [#allocation6], %s39
      %s41 = sshll.u32 [#allocation7], 4
      %s42 = int_to_ptr.vmem [resolvable:$true] %s41
      %47 = dma.hbm_to_vmem [thread:$0]  %s2, 12288, %s42, [#allocation6], 128, 128, 8
    $region13: #{tpu_custom_call.1} parent=1 // pred_fallthru
      _
    // Predicated region
    $region14: #{tpu_custom_call.1} parent=1 // pred_check
      _
    $region15: #{tpu_custom_call.1} parent=1 // pred_check_branch
      %49 = sbr.rel (0) target = $region17
    $region16: #{tpu_custom_call.1} parent=1 // pred_region
      %s51 = ssub.s32 3200, 3200
      %52 = vsyncadd [#allocation9], %s51
      %s53 = sshll.u32 [#allocation8], 4
      %s54 = int_to_ptr.vmem [resolvable:$true] %s53
      %59 = dma.hbm_to_vmem [thread:$0]  %s3, 3200, %s54, [#allocation9], 128, 128, 8
    $region17: #{tpu_custom_call.1} parent=1 // pred_fallthru
      _
    // Predicated region
    $region18: #{tpu_custom_call.1} parent=1 // pred_check
      _
    $region19: #{tpu_custom_call.1} parent=1 // pred_check_branch
      %61 = sbr.rel (0) target = $region21
    $region20: #{tpu_custom_call.1} parent=1 // pred_region
      _
    $region21: #{tpu_custom_call.1} parent=1 // pred_fallthru
      _
    // Predicated region
    $region22: #{tpu_custom_call.1} parent=1 // pred_check
      _
    $region23: #{tpu_custom_call.1} parent=1 // pred_check_branch
      %63 = sbr.rel (0) target = $region25
    $region24: #{tpu_custom_call.1} parent=1 // pred_region
      _
    $region25: #{tpu_custom_call.1} parent=1 // pred_fallthru
      _
    // Predicated region
    $region26: #{tpu_custom_call.1} parent=1 // pred_check
      _
    $region27: #{tpu_custom_call.1} parent=1 // pred_check_branch
      %65 = sbr.rel (0) target = $region29
    $region28: #{tpu_custom_call.1} parent=1 // pred_region
      _
    $region29: #{tpu_custom_call.1} parent=1 // pred_fallthru
      _
    // Predicated region
    $region30: #{tpu_custom_call.1} parent=1 // pred_check
      _
    $region31: #{tpu_custom_call.1} parent=1 // pred_check_branch
      %67 = sbr.rel (0) target = $region33
    $region32: #{tpu_custom_call.1} parent=1 // pred_region
      %68 = dma.done [#allocation3], 768
    $region33: #{tpu_custom_call.1} parent=1 // pred_fallthru
      _
    // Predicated region
    $region34: #{tpu_custom_call.1} parent=1 // pred_check
      _
    $region35: #{tpu_custom_call.1} parent=1 // pred_check_branch
      %70 = sbr.rel (0) target = $region37
    $region36: #{tpu_custom_call.1} parent=1 // pred_region
      %71 = dma.done [#allocation6], 256
    $region37: #{tpu_custom_call.1} parent=1 // pred_fallthru
      _
    // Predicated region
    $region38: #{tpu_custom_call.1} parent=1 // pred_check
      _
    $region39: #{tpu_custom_call.1} parent=1 // pred_check_branch
      %73 = sbr.rel (0) target = $region41
    $region40: #{tpu_custom_call.1} parent=1 // pred_region
      %74 = dma.done [#allocation6], 12288
    $region41: #{tpu_custom_call.1} parent=1 // pred_fallthru
      _
    // Predicated region
    $region42: #{tpu_custom_call.1} parent=1 // pred_check
      _
    $region43: #{tpu_custom_call.1} parent=1 // pred_check_branch
      %76 = sbr.rel (0) target = $region45
    $region44: #{tpu_custom_call.1} parent=1 // pred_region
      %77 = dma.done [#allocation9], 3200
    $region45: #{tpu_custom_call.1} parent=1 // pred_fallthru
      _
    %v78 = vld [vmem:[#allocation2] sm:$0xff]
    %v79 = vld [vmem:[#allocation2 + $0x8] sm:$0xff]
    %v80 = vld [vmem:[#allocation2 + $0x10] sm:$0xff]
    %v81 = vld [vmem:[#allocation2 + $0x18] sm:$0xff]
    %v82 = vld [vmem:[#allocation2 + $0x20] sm:$0xff]
    %v83 = vld [vmem:[#allocation2 + $0x28] sm:$0xff]
    %v84 = vld [vmem:[#allocation7] sm:$0xff]
    %v85 = vld [vmem:[#allocation7 + $0x8] sm:$0xff]
    %v86 = vld [vmem:[#allocation7 + $0x10] sm:$0xff]
    %v87 = vld [vmem:[#allocation7 + $0x18] sm:$0xff]
    %v88 = vld [vmem:[#allocation7 + $0x20] sm:$0xff]
    %v89 = vld [vmem:[#allocation7 + $0x28] sm:$0xff]
    %v90 = vld [vmem:[#allocation7 + $0x30] sm:$0xff]
    %v91 = vld [vmem:[#allocation7 + $0x38] sm:$0xff]
    %v92 = vld [vmem:[#allocation7 + $0x40] sm:$0xff]
    %v93 = vld [vmem:[#allocation7 + $0x48] sm:$0xff]
    %v94 = vld [vmem:[#allocation7 + $0x50] sm:$0xff]
    %v95 = vld [vmem:[#allocation7 + $0x58] sm:$0xff]
    %v96 = vld [vmem:[#allocation7 + $0x60] sm:$0xff]
    %v97 = vld [vmem:[#allocation7 + $0x68] sm:$0xff]
    %v98 = vld [vmem:[#allocation7 + $0x70] sm:$0xff]
    %v99 = vld [vmem:[#allocation7 + $0x78] sm:$0xff]
    %v100 = vld [vmem:[#allocation7 + $0x80] sm:$0xff]
    %v101 = vld [vmem:[#allocation7 + $0x88] sm:$0xff]
    %v102 = vld [vmem:[#allocation7 + $0x90] sm:$0xff]
    %v103 = vld [vmem:[#allocation7 + $0x98] sm:$0xff]
    %v104 = vld [vmem:[#allocation7 + $0xa0] sm:$0xff]
    %v105 = vld [vmem:[#allocation7 + $0xa8] sm:$0xff]
    %v106 = vld [vmem:[#allocation7 + $0xb0] sm:$0xff]
    %v107 = vld [vmem:[#allocation7 + $0xb8] sm:$0xff]
    %v108 = vld [vmem:[#allocation7 + $0xc0] sm:$0xff]
    %v109 = vld [vmem:[#allocation7 + $0xc8] sm:$0xff]
    %v110 = vld [vmem:[#allocation7 + $0xd0] sm:$0xff]
    %v111 = vld [vmem:[#allocation7 + $0xd8] sm:$0xff]
    %v112 = vld [vmem:[#allocation7 + $0xe0] sm:$0xff]
    %v113 = vld [vmem:[#allocation7 + $0xe8] sm:$0xff]
    %v114 = vld [vmem:[#allocation7 + $0xf0] sm:$0xff]
    %v115 = vld [vmem:[#allocation7 + $0xf8] sm:$0xff]
    %v116 = vld [vmem:[#allocation7 + $0x100] sm:$0xff]
    %v117 = vld [vmem:[#allocation7 + $0x108] sm:$0xff]
    %v118 = vld [vmem:[#allocation7 + $0x110] sm:$0xff]
    %v119 = vld [vmem:[#allocation7 + $0x118] sm:$0xff]
    %v120 = vld [vmem:[#allocation7 + $0x120] sm:$0xff]
    %v121 = vld [vmem:[#allocation7 + $0x128] sm:$0xff]
    %v122 = vld [vmem:[#allocation7 + $0x130] sm:$0xff]
    %v123 = vld [vmem:[#allocation7 + $0x138] sm:$0xff]
    %v124 = vld [vmem:[#allocation7 + $0x140] sm:$0xff]
    %v125 = vld [vmem:[#allocation7 + $0x148] sm:$0xff]
    %v126 = vld [vmem:[#allocation7 + $0x150] sm:$0xff]
    %v127 = vld [vmem:[#allocation7 + $0x158] sm:$0xff]
    %v128 = vld [vmem:[#allocation7 + $0x160] sm:$0xff]
    %v129 = vld [vmem:[#allocation7 + $0x168] sm:$0xff]
    %v130 = vld [vmem:[#allocation7 + $0x170] sm:$0xff]
    %v131 = vld [vmem:[#allocation7 + $0x178] sm:$0xff]
    %v132 = vld [vmem:[#allocation7 + $0x180] sm:$0xff]
    %v133 = vld [vmem:[#allocation7 + $0x188] sm:$0xff]
    %v134 = vld [vmem:[#allocation7 + $0x190] sm:$0xff]
    %v135 = vld [vmem:[#allocation7 + $0x198] sm:$0xff]
    %v136 = vld [vmem:[#allocation7 + $0x1a0] sm:$0xff]
    %v137 = vld [vmem:[#allocation7 + $0x1a8] sm:$0xff]
    %v138 = vld [vmem:[#allocation7 + $0x1b0] sm:$0xff]
    %v139 = vld [vmem:[#allocation7 + $0x1b8] sm:$0xff]
    %v140 = vld [vmem:[#allocation7 + $0x1c0] sm:$0xff]
    %v141 = vld [vmem:[#allocation7 + $0x1c8] sm:$0xff]
    %v142 = vld [vmem:[#allocation7 + $0x1d0] sm:$0xff]
    %v143 = vld [vmem:[#allocation7 + $0x1d8] sm:$0xff]
    %v144 = vld [vmem:[#allocation7 + $0x1e0] sm:$0xff]
    %v145 = vld [vmem:[#allocation7 + $0x1e8] sm:$0xff]
    %v146 = vld [vmem:[#allocation7 + $0x1f0] sm:$0xff]
    %v147 = vld [vmem:[#allocation7 + $0x1f8] sm:$0xff]
    %v148 = vld [vmem:[#allocation7 + $0x200] sm:$0xff]
    %v149 = vld [vmem:[#allocation7 + $0x208] sm:$0xff]
    %v150 = vld [vmem:[#allocation7 + $0x210] sm:$0xff]
    %v151 = vld [vmem:[#allocation7 + $0x218] sm:$0xff]
    %v152 = vld [vmem:[#allocation7 + $0x220] sm:$0xff]
    %v153 = vld [vmem:[#allocation7 + $0x228] sm:$0xff]
    %v154 = vld [vmem:[#allocation7 + $0x230] sm:$0xff]
    %v155 = vld [vmem:[#allocation7 + $0x238] sm:$0xff]
    %v156 = vld [vmem:[#allocation7 + $0x240] sm:$0xff]
    %v157 = vld [vmem:[#allocation7 + $0x248] sm:$0xff]
    %v158 = vld [vmem:[#allocation7 + $0x250] sm:$0xff]
    %v159 = vld [vmem:[#allocation7 + $0x258] sm:$0xff]
    %v160 = vld [vmem:[#allocation7 + $0x260] sm:$0xff]
    %v161 = vld [vmem:[#allocation7 + $0x268] sm:$0xff]
    %v162 = vld [vmem:[#allocation7 + $0x270] sm:$0xff]
    %v163 = vld [vmem:[#allocation7 + $0x278] sm:$0xff]
    %v164 = vld [vmem:[#allocation7 + $0x280] sm:$0xff]
    %v165 = vld [vmem:[#allocation7 + $0x288] sm:$0xff]
    %v166 = vld [vmem:[#allocation7 + $0x290] sm:$0xff]
    %v167 = vld [vmem:[#allocation7 + $0x298] sm:$0xff]
    %v168 = vld [vmem:[#allocation7 + $0x2a0] sm:$0xff]
    %v169 = vld [vmem:[#allocation7 + $0x2a8] sm:$0xff]
    %v170 = vld [vmem:[#allocation7 + $0x2b0] sm:$0xff]
    %v171 = vld [vmem:[#allocation7 + $0x2b8] sm:$0xff]
    %v172 = vld [vmem:[#allocation7 + $0x2c0] sm:$0xff]
    %v173 = vld [vmem:[#allocation7 + $0x2c8] sm:$0xff]
    %v174 = vld [vmem:[#allocation7 + $0x2d0] sm:$0xff]
    %v175 = vld [vmem:[#allocation7 + $0x2d8] sm:$0xff]
    %v176 = vld [vmem:[#allocation7 + $0x2e0] sm:$0xff]
    %v177 = vld [vmem:[#allocation7 + $0x2e8] sm:$0xff]
    %v178 = vld [vmem:[#allocation7 + $0x2f0] sm:$0xff]
    %v179 = vld [vmem:[#allocation7 + $0x2f8] sm:$0xff]
    %v180 = vld [vmem:[#allocation5] sm:$0xff]
    %v181 = vld [vmem:[#allocation5 + $0x8] sm:$0xff]
    %v182 = vld [vmem:[#allocation8] sm:$0xff]
    %v183 = vld [vmem:[#allocation8 + $0x8] sm:$0xff]
    %v184 = vld [vmem:[#allocation8 + $0x10] sm:$0xff]
    %v185 = vld [vmem:[#allocation8 + $0x18] sm:$0xff]
    %v186 = vld [vmem:[#allocation8 + $0x20] sm:$0xff]
    %v187 = vld [vmem:[#allocation8 + $0x28] sm:$0xff]
    %v188 = vld [vmem:[#allocation8 + $0x30] sm:$0xff]
    %v189 = vld [vmem:[#allocation8 + $0x38] sm:$0xff]
    %v190 = vld [vmem:[#allocation8 + $0x40] sm:$0xff]
    %v191 = vld [vmem:[#allocation8 + $0x48] sm:$0xff]
    %v192 = vld [vmem:[#allocation8 + $0x50] sm:$0xff]
    %v193 = vld [vmem:[#allocation8 + $0x58] sm:$0xff]
    %v194 = vld [vmem:[#allocation8 + $0x60] sm:$0xff]
    %v195 = vld [vmem:[#allocation8 + $0x68] sm:$0xff]
    %v196 = vld [vmem:[#allocation8 + $0x70] sm:$0xff]
    %v197 = vld [vmem:[#allocation8 + $0x78] sm:$0xff]
    %v198 = vld [vmem:[#allocation8 + $0x80] sm:$0xff]
    %v199 = vld [vmem:[#allocation8 + $0x88] sm:$0xff]
    %v200 = vld [vmem:[#allocation8 + $0x90] sm:$0xff]
    %v201 = vld [vmem:[#allocation8 + $0x98] sm:$0xff]
    %v202 = vld [vmem:[#allocation8 + $0xa0] sm:$0xff]
    %v203 = vld [vmem:[#allocation8 + $0xa8] sm:$0xff]
    %v204 = vld [vmem:[#allocation8 + $0xb0] sm:$0xff]
    %v205 = vld [vmem:[#allocation8 + $0xb8] sm:$0xff]
    %v206 = vld [vmem:[#allocation8 + $0xc0] sm:$0x3]
    %vm207 = vcmask 539648
    %v209 = vsel %vm207, %v181, 0
    %vm211 = vcmask 1041408
    %v213 = vsel %vm211, %v206, 0
    %215 = vmatprep.subr.mxu0 0.0
    %216 = vmatpush1.msra.mxu0 %v197
    %217 = vmatprep.subr.mxu0 0.0
    %218 = vmatpush1.msra.mxu0 %v196
    %219 = vmatprep.subr.mxu0 0.0
    %220 = vmatpush1.msra.mxu0 %v195
    %221 = vmatprep.subr.mxu0 0.0
    %222 = vmatpush1.msra.mxu0 %v194
    %223 = vmatprep.subr.mxu0 0.0
    %224 = vmatpush1.msra.mxu0 %v193
    %225 = vmatprep.subr.mxu0 0.0
    %226 = vmatpush1.msra.mxu0 %v192
    %227 = vmatprep.subr.mxu0 0.0
    %228 = vmatpush1.msra.mxu0 %v191
    %229 = vmatprep.subr.mxu0 0.0
    %230 = vmatpush1.msra.mxu0 %v190
    %231 = vmatprep.subr.mxu0 0.0
    %232 = vmatpush1.msra.mxu0 %v189
    %233 = vmatprep.subr.mxu0 0.0
    %234 = vmatpush1.msra.mxu0 %v188
    %235 = vmatprep.subr.mxu0 0.0
    %236 = vmatpush1.msra.mxu0 %v187
    %237 = vmatprep.subr.mxu0 0.0
    %238 = vmatpush1.msra.mxu0 %v186
    %239 = vmatprep.subr.mxu0 0.0
    %240 = vmatpush1.msra.mxu0 %v185
    %241 = vmatprep.subr.mxu0 0.0
    %242 = vmatpush1.msra.mxu0 %v184
    %243 = vmatprep.subr.mxu0 0.0
    %244 = vmatpush1.msra.mxu0 %v183
    %245 = vmatprep.subr.mxu0 0.0
    %246 = vmatpush1.msra.mxu0 %v182
    %247 = vmatprep.subr.mxu0 0.0
    %248 = vmatpush2.msra.mxu0 0.0
    %249 = vmatprep.subr.mxu0 0.0
    %250 = vmatpush2.msra.mxu0 0.0
    %251 = vmatprep.subr.mxu0 0.0
    %252 = vmatpush2.msra.mxu0 0.0
    %253 = vmatprep.subr.mxu0 0.0
    %254 = vmatpush2.msra.mxu0 0.0
    %255 = vmatprep.subr.mxu0 0.0
    %256 = vmatpush2.msra.mxu0 0.0
    %257 = vmatprep.subr.mxu0 0.0
    %258 = vmatpush2.msra.mxu0 0.0
    %259 = vmatprep.subr.mxu0 0.0
    %260 = vmatpush2.msra.mxu0 0.0
    %261 = vmatprep.subr.mxu0 0.0
    %262 = vmatpush2.msra.mxu0 %v213
    %263 = vmatprep.subr.mxu0 0.0
    %264 = vmatpush2.msra.mxu0 %v205
    %265 = vmatprep.subr.mxu0 0.0
    %266 = vmatpush2.msra.mxu0 %v204
    %267 = vmatprep.subr.mxu0 0.0
    %268 = vmatpush2.msra.mxu0 %v203
    %269 = vmatprep.subr.mxu0 0.0
    %270 = vmatpush2.msra.mxu0 %v202
    %271 = vmatprep.subr.mxu0 0.0
    %272 = vmatpush2.msra.mxu0 %v201
    %273 = vmatprep.subr.mxu0 0.0
    %274 = vmatpush2.msra.mxu0 %v200
    %275 = vmatprep.subr.mxu0 0.0
    %276 = vmatpush2.msra.mxu0 %v199
    %277 = vmatprep.subr.mxu0 0.0
    %278 = vmatpush2.msra.mxu0 %v198
    %279 = vmatprep.mubr.f32.mxu0 %v209
    %280 = vmatmul.mubr.f32.gmra.mxu0 %v180
    %v281 = vpop.f32.mrf.mxu0
    %v282 = vadd.f32 0.0, %v281
    %v283 = vpop.f32.mrf.mxu0
    %284 = vdwg.mxu0
    %285 = vmatprep.subr.mxu0 0.0
    %286 = vmatpush1.msra.mxu0 %v99
    %287 = vmatprep.subr.mxu0 0.0
    %288 = vmatpush1.msra.mxu0 %v98
    %289 = vmatprep.subr.mxu0 0.0
    %290 = vmatpush1.msra.mxu0 %v97
    %291 = vmatprep.subr.mxu0 0.0
    %292 = vmatpush1.msra.mxu0 %v96
    %293 = vmatprep.subr.mxu0 0.0
    %294 = vmatpush1.msra.mxu0 %v95
    %295 = vmatprep.subr.mxu0 0.0
    %296 = vmatpush1.msra.mxu0 %v94
    %297 = vmatprep.subr.mxu0 0.0
    %298 = vmatpush1.msra.mxu0 %v93
    %299 = vmatprep.subr.mxu0 0.0
    %300 = vmatpush1.msra.mxu0 %v92
    %301 = vmatprep.subr.mxu0 0.0
    %302 = vmatpush1.msra.mxu0 %v91
    %303 = vmatprep.subr.mxu0 0.0
    %304 = vmatpush1.msra.mxu0 %v90
    %305 = vmatprep.subr.mxu0 0.0
    %306 = vmatpush1.msra.mxu0 %v89
    %307 = vmatprep.subr.mxu0 0.0
    %308 = vmatpush1.msra.mxu0 %v88
    %309 = vmatprep.subr.mxu0 0.0
    %310 = vmatpush1.msra.mxu0 %v87
    %311 = vmatprep.subr.mxu0 0.0
    %312 = vmatpush1.msra.mxu0 %v86
    %313 = vmatprep.subr.mxu0 0.0
    %314 = vmatpush1.msra.mxu0 %v85
    %315 = vmatprep.subr.mxu0 0.0
    %316 = vmatpush1.msra.mxu0 %v84
    %317 = vmatprep.subr.mxu0 0.0
    %318 = vmatpush2.msra.mxu0 %v115
    %319 = vmatprep.subr.mxu0 0.0
    %320 = vmatpush2.msra.mxu0 %v114
    %321 = vmatprep.subr.mxu0 0.0
    %322 = vmatpush2.msra.mxu0 %v113
    %323 = vmatprep.subr.mxu0 0.0
    %324 = vmatpush2.msra.mxu0 %v112
    %325 = vmatprep.subr.mxu0 0.0
    %326 = vmatpush2.msra.mxu0 %v111
    %327 = vmatprep.subr.mxu0 0.0
    %328 = vmatpush2.msra.mxu0 %v110
    %329 = vmatprep.subr.mxu0 0.0
    %330 = vmatpush2.msra.mxu0 %v109
    %331 = vmatprep.subr.mxu0 0.0
    %332 = vmatpush2.msra.mxu0 %v108
    %333 = vmatprep.subr.mxu0 0.0
    %334 = vmatpush2.msra.mxu0 %v107
    %335 = vmatprep.subr.mxu0 0.0
    %336 = vmatpush2.msra.mxu0 %v106
    %337 = vmatprep.subr.mxu0 0.0
    %338 = vmatpush2.msra.mxu0 %v105
    %339 = vmatprep.subr.mxu0 0.0
    %340 = vmatpush2.msra.mxu0 %v104
    %341 = vmatprep.subr.mxu0 0.0
    %342 = vmatpush2.msra.mxu0 %v103
    %343 = vmatprep.subr.mxu0 0.0
    %344 = vmatpush2.msra.mxu0 %v102
    %345 = vmatprep.subr.mxu0 0.0
    %346 = vmatpush2.msra.mxu0 %v101
    %347 = vmatprep.subr.mxu0 0.0
    %348 = vmatpush2.msra.mxu0 %v100
    %349 = vmatprep.mubr.f32.mxu0 %v79
    %350 = vmatmul.mubr.f32.gmra.mxu0 %v78
    %v351 = vpop.f32.mrf.mxu0
    %v352 = vadd.f32 %v282, %v351
    %v353 = vpop.f32.mrf.mxu0
    %354 = vdwg.mxu0
    %355 = vmatprep.subr.mxu0 0.0
    %356 = vmatpush1.msra.mxu0 %v131
    %357 = vmatprep.subr.mxu0 0.0
    %358 = vmatpush1.msra.mxu0 %v130
    %359 = vmatprep.subr.mxu0 0.0
    %360 = vmatpush1.msra.mxu0 %v129
    %361 = vmatprep.subr.mxu0 0.0
    %362 = vmatpush1.msra.mxu0 %v128
    %363 = vmatprep.subr.mxu0 0.0
    %364 = vmatpush1.msra.mxu0 %v127
    %365 = vmatprep.subr.mxu0 0.0
    %366 = vmatpush1.msra.mxu0 %v126
    %367 = vmatprep.subr.mxu0 0.0
    %368 = vmatpush1.msra.mxu0 %v125
    %369 = vmatprep.subr.mxu0 0.0
    %370 = vmatpush1.msra.mxu0 %v124
    %371 = vmatprep.subr.mxu0 0.0
    %372 = vmatpush1.msra.mxu0 %v123
    %373 = vmatprep.subr.mxu0 0.0
    %374 = vmatpush1.msra.mxu0 %v122
    %375 = vmatprep.subr.mxu0 0.0
    %376 = vmatpush1.msra.mxu0 %v121
    %377 = vmatprep.subr.mxu0 0.0
    %378 = vmatpush1.msra.mxu0 %v120
    %379 = vmatprep.subr.mxu0 0.0
    %380 = vmatpush1.msra.mxu0 %v119
    %381 = vmatprep.subr.mxu0 0.0
    %382 = vmatpush1.msra.mxu0 %v118
    %383 = vmatprep.subr.mxu0 0.0
    %384 = vmatpush1.msra.mxu0 %v117
    %385 = vmatprep.subr.mxu0 0.0
    %386 = vmatpush1.msra.mxu0 %v116
    %387 = vmatprep.subr.mxu0 0.0
    %388 = vmatpush2.msra.mxu0 %v147
    %389 = vmatprep.subr.mxu0 0.0
    %390 = vmatpush2.msra.mxu0 %v146
    %391 = vmatprep.subr.mxu0 0.0
    %392 = vmatpush2.msra.mxu0 %v145
    %393 = vmatprep.subr.mxu0 0.0
    %394 = vmatpush2.msra.mxu0 %v144
    %395 = vmatprep.subr.mxu0 0.0
    %396 = vmatpush2.msra.mxu0 %v143
    %397 = vmatprep.subr.mxu0 0.0
    %398 = vmatpush2.msra.mxu0 %v142
    %399 = vmatprep.subr.mxu0 0.0
    %400 = vmatpush2.msra.mxu0 %v141
    %401 = vmatprep.subr.mxu0 0.0
    %402 = vmatpush2.msra.mxu0 %v140
    %403 = vmatprep.subr.mxu0 0.0
    %404 = vmatpush2.msra.mxu0 %v139
    %405 = vmatprep.subr.mxu0 0.0
    %406 = vmatpush2.msra.mxu0 %v138
    %407 = vmatprep.subr.mxu0 0.0
    %408 = vmatpush2.msra.mxu0 %v137
    %409 = vmatprep.subr.mxu0 0.0
    %410 = vmatpush2.msra.mxu0 %v136
    %411 = vmatprep.subr.mxu0 0.0
    %412 = vmatpush2.msra.mxu0 %v135
    %413 = vmatprep.subr.mxu0 0.0
    %414 = vmatpush2.msra.mxu0 %v134
    %415 = vmatprep.subr.mxu0 0.0
    %416 = vmatpush2.msra.mxu0 %v133
    %417 = vmatprep.subr.mxu0 0.0
    %418 = vmatpush2.msra.mxu0 %v132
    %419 = vmatprep.mubr.f32.mxu0 %v81
    %420 = vmatmul.mubr.f32.gmra.mxu0 %v80
    %v421 = vpop.f32.mrf.mxu0
    %v422 = vadd.f32 %v352, %v421
    %v423 = vpop.f32.mrf.mxu0
    %424 = vdwg.mxu0
    %425 = vmatprep.subr.mxu0 0.0
    %426 = vmatpush1.msra.mxu0 %v163
    %427 = vmatprep.subr.mxu0 0.0
    %428 = vmatpush1.msra.mxu0 %v162
    %429 = vmatprep.subr.mxu0 0.0
    %430 = vmatpush1.msra.mxu0 %v161
    %431 = vmatprep.subr.mxu0 0.0
    %432 = vmatpush1.msra.mxu0 %v160
    %433 = vmatprep.subr.mxu0 0.0
    %434 = vmatpush1.msra.mxu0 %v159
    %435 = vmatprep.subr.mxu0 0.0
    %436 = vmatpush1.msra.mxu0 %v158
    %437 = vmatprep.subr.mxu0 0.0
    %438 = vmatpush1.msra.mxu0 %v157
    %439 = vmatprep.subr.mxu0 0.0
    %440 = vmatpush1.msra.mxu0 %v156
    %441 = vmatprep.subr.mxu0 0.0
    %442 = vmatpush1.msra.mxu0 %v155
    %443 = vmatprep.subr.mxu0 0.0
    %444 = vmatpush1.msra.mxu0 %v154
    %445 = vmatprep.subr.mxu0 0.0
    %446 = vmatpush1.msra.mxu0 %v153
    %447 = vmatprep.subr.mxu0 0.0
    %448 = vmatpush1.msra.mxu0 %v152
    %449 = vmatprep.subr.mxu0 0.0
    %450 = vmatpush1.msra.mxu0 %v151
    %451 = vmatprep.subr.mxu0 0.0
    %452 = vmatpush1.msra.mxu0 %v150
    %453 = vmatprep.subr.mxu0 0.0
    %454 = vmatpush1.msra.mxu0 %v149
    %455 = vmatprep.subr.mxu0 0.0
    %456 = vmatpush1.msra.mxu0 %v148
    %457 = vmatprep.subr.mxu0 0.0
    %458 = vmatpush2.msra.mxu0 %v179
    %459 = vmatprep.subr.mxu0 0.0
    %460 = vmatpush2.msra.mxu0 %v178
    %461 = vmatprep.subr.mxu0 0.0
    %462 = vmatpush2.msra.mxu0 %v177
    %463 = vmatprep.subr.mxu0 0.0
    %464 = vmatpush2.msra.mxu0 %v176
    %465 = vmatprep.subr.mxu0 0.0
    %466 = vmatpush2.msra.mxu0 %v175
    %467 = vmatprep.subr.mxu0 0.0
    %468 = vmatpush2.msra.mxu0 %v174
    %469 = vmatprep.subr.mxu0 0.0
    %470 = vmatpush2.msra.mxu0 %v173
    %471 = vmatprep.subr.mxu0 0.0
    %472 = vmatpush2.msra.mxu0 %v172
    %473 = vmatprep.subr.mxu0 0.0
    %474 = vmatpush2.msra.mxu0 %v171
    %475 = vmatprep.subr.mxu0 0.0
    %476 = vmatpush2.msra.mxu0 %v170
    %477 = vmatprep.subr.mxu0 0.0
    %478 = vmatpush2.msra.mxu0 %v169
    %479 = vmatprep.subr.mxu0 0.0
    %480 = vmatpush2.msra.mxu0 %v168
    %481 = vmatprep.subr.mxu0 0.0
    %482 = vmatpush2.msra.mxu0 %v167
    %483 = vmatprep.subr.mxu0 0.0
    %484 = vmatpush2.msra.mxu0 %v166
    %485 = vmatprep.subr.mxu0 0.0
    %486 = vmatpush2.msra.mxu0 %v165
    %487 = vmatprep.subr.mxu0 0.0
    %488 = vmatpush2.msra.mxu0 %v164
    %489 = vmatprep.mubr.f32.mxu0 %v83
    %490 = vmatmul.mubr.f32.gmra.mxu0 %v82
    %v491 = vpop.f32.mrf.mxu0
    %v492 = vadd.f32 %v422, %v491
    %v493 = vpop.f32.mrf.mxu0
    %494 = vdwg.mxu0
    %v495 = vld [vmem:[%s4] sm:$0x1]
    %v497 = vlaneseq
    %v498 = vshrl.u32 %v497, 7
    %v499 = vsub.s32 0, %v498
    %v500 = vrot.slane %v495, %v499
    %v502 = vadd.f32 %v492, %v500
    %v503 = vtanh.pop %v502
    %v504 = vld [vmem:[%s5] sm:$0x1]
    %v506 = vlaneseq
    %v507 = vshrl.u32 %v506, 7
    %v508 = vsub.s32 0, %v507
    %v509 = vrot.slane %v504, %v508
    %v511 = vmul.f32 %v503, %v509
    %v512 = vld [vmem:[%s6] sm:$0x1]
    %v514 = vlaneseq
    %v515 = vshrl.u32 %v514, 7
    %v516 = vsub.s32 0, %v515
    %v517 = vrot.slane %v512, %v516
    %v519 = vadd.f32 %v511, %v517
    %520 = vst [vmem:[#allocation10] sm:$0xff] %v519
    // Predicated region
    $region46: #{tpu_custom_call.1} parent=1 // pred_check
      _
    $region47: #{tpu_custom_call.1} parent=1 // pred_check_branch
      %522 = sbr.rel (0) target = $region49
    $region48: #{tpu_custom_call.1} parent=1 // pred_region
      %s524 = ssub.s32 128, 128
      %525 = vsyncadd [#allocation4], %s524
      %s527 = sshll.u32 [#allocation10], 4
      %s528 = int_to_ptr.vmem [resolvable:$true] %s527
      %530 = dma.vmem_to_hbm [thread:$0]  %s528, 128, %s7, [#allocation4]
    $region49: #{tpu_custom_call.1} parent=1 // pred_fallthru
      _
    // Predicated region
    $region50: #{tpu_custom_call.1} parent=1 // pred_check
      _
    $region51: #{tpu_custom_call.1} parent=1 // pred_check_branch
      %532 = sbr.rel (0) target = $region53
    $region52: #{tpu_custom_call.1} parent=1 // pred_region
      %533 = dma.done [#allocation4], 128
    $region53: #{tpu_custom_call.1} parent=1 // pred_fallthru
      _
    %534 = vsyncpa [#allocation3], 1
    %535 = vsyncpa [#allocation6], 1
    %536 = vsyncpa [#allocation9], 1
    %537 = vsyncpa [#allocation4], 1

</llo_original>
